<compile_context>
chip_gen: v7x
topology: tpu7x:2x2x1
jax: 0.10.0
libtpu: 0.0.40
codegen_flags: <defaults>
</compile_context>

<pallas_src>
import jax
import jax.numpy as jnp
from jax.experimental import pallas as pl
from jax.experimental.pallas import tpu as pltpu

EPS = 1e-5
LEAKY_SLOPE = 0.1

_VMEM_BUDGET_BYTES = 16 * 1024 * 1024   # explicitly-accounted buffers must fit here
_VMEM_LIMIT_BYTES = 32 * 1024 * 1024    # scoped-VMEM ceiling requested from Mosaic (<= physical on all gens)


def _round_up(x, m):
    return (x + m - 1) // m * m


def _vmem_bytes(cin_p, cout_p, l_tile, mm_bytes, out_bytes):
    """Rough accounting: double-buffered pipeline buffers + per-tile f32 temporaries."""
    x_bufs = 2 * cin_p * l_tile * mm_bytes
    w_bufs = 2 * cout_p * cin_p * mm_bytes
    o_bufs = 2 * cout_p * l_tile * out_bytes
    y_tmp = 2 * cout_p * l_tile * 4           # f32 y (and y*y) per-tile temporaries
    small = 16 * cout_p * 4                    # stats / scale / shift vectors
    return x_bufs + w_bufs + o_bufs + y_tmp + small


def _pick_l_tile(L, cin_p, cout_p, mm_bytes, out_bytes):
    l_tile = min(1024, _round_up(L, 128))      # >= 512-lane tiles when L allows (amortizes grid overhead)
    while l_tile > 128 and _vmem_bytes(cin_p, cout_p, l_tile, mm_bytes, out_bytes) > _VMEM_BUDGET_BYTES:
        l_tile = max(128, _round_up(l_tile // 2, 128))
    return l_tile


# ---------------- Pass 1: per-channel batch statistics ----------------
def _stats_kernel(w_ref, x_ref, s1_ref, s2_ref):
    # w_ref : (Cout_p, Cin_p)      zero-padded conv weight
    # x_ref : (1, Cin_p, L_TILE)   zero-padded activation tile
    # s1/s2 : (Cout_p, 1) f32      resident accumulators (same output block every grid step)
    @pl.when(jnp.logical_and(pl.program_id(0) == 0, pl.program_id(1) == 0))
    def _():
        s1_ref[...] = jnp.zeros_like(s1_ref)
        s2_ref[...] = jnp.zeros_like(s2_ref)

    y = jnp.dot(w_ref[...], x_ref[0], preferred_element_type=jnp.float32)   # (Cout_p, L_TILE) f32
    # Padded Cin rows / L lanes of x are zero (and bias is dropped), so padded columns of y are
    # exactly zero and contribute nothing to the sums -> dividing by the true count is exact.
    s1_ref[...] += jnp.sum(y, axis=1, keepdims=True)
    s2_ref[...] += jnp.sum(y * y, axis=1, keepdims=True)


# ---------------- Pass 2: recompute y, apply folded BN + LeakyReLU ----------------
def _apply_kernel(scale_ref, shift_ref, w_ref, x_ref, o_ref):
    # scale/shift: (Cout_p, 1) f32, broadcast along lanes
    y = jnp.dot(w_ref[...], x_ref[0], preferred_element_type=jnp.float32)   # (Cout_p, L_TILE) f32
    z = y * scale_ref[...] + shift_ref[...]
    o_ref[0] = jnp.where(z >= 0, z, LEAKY_SLOPE * z).astype(o_ref.dtype)


def conv_bn_relu_1d_pallas(x, weight, bias, gamma, beta, *, matmul_dtype=jnp.bfloat16):
    """Forward of conv_bn_relu_1d (kernel_size=1) with training-mode BatchNorm1d.

    x:      (N, C_in, L)
    weight: (C_out, C_in, 1)   PyTorch Conv1d weight layout
    bias:   (C_out,)           accepted for API parity; cancels exactly under batch-stat BN
    gamma, beta: (C_out,)      BatchNorm1d affine parameters

    matmul_dtype: operand dtype for the MXU matmuls (default bf16; accumulation stays f32).
    """
    del bias  # exact cancellation in (y - mean) under batch statistics
    if weight.shape[-1] != 1:
        # TODO(synk): general kernel_size>1 / padding>0 Conv1d not implemented; module default is k=1, padding=0.
        raise NotImplementedError("only kernel_size=1 (pointwise) Conv1d is supported")

    N, Cin, L = x.shape
    Cout = weight.shape[0]
    count = N * L

    mm_dtype = jnp.dtype(matmul_dtype)
    mm_bytes = mm_dtype.itemsize
    out_dtype = x.dtype
    out_bytes = jnp.dtype(out_dtype).itemsize

    # Sublane alignment: 16 rows for 2-byte packed dtypes, 8 for f32; Cout_p always 16 (covers both).
    sub = 16 if mm_bytes == 2 else 8
    cin_p = _round_up(Cin, sub)
    cout_p = _round_up(Cout, 16)
    l_tile = _pick_l_tile(L, cin_p, cout_p, mm_bytes, out_bytes)
    l_p = _round_up(L, l_tile)
    n_l = l_p // l_tile

    # Zero-pad in the native (N, C, L) layout -- no transposes anywhere.
    if (Cin, L) == (cin_p, l_p) and x.dtype == mm_dtype:
        x_p = x
    else:
        x_p = jnp.zeros((N, cin_p, l_p), mm_dtype).at[:, :Cin, :L].set(x.astype(mm_dtype))
    w_p = jnp.zeros((cout_p, cin_p), mm_dtype).at[:Cout, :Cin].set(weight[:, :, 0].astype(mm_dtype))

    grid = (N, n_l)
    w_spec = pl.BlockSpec((cout_p, cin_p), lambda n, l: (0, 0))
    x_spec = pl.BlockSpec((1, cin_p, l_tile), lambda n, l: (n, 0, l))
    vec_spec = pl.BlockSpec((cout_p, 1), lambda n, l: (0, 0))

    # ---- Pass 1: batch statistics (reduction over both grid axes -> "arbitrary") ----
    s1, s2 = pl.pallas_call(
        _stats_kernel,
        grid=grid,
        in_specs=[w_spec, x_spec],
        out_specs=(vec_spec, vec_spec),
        out_shape=(jax.ShapeDtypeStruct((cout_p, 1), jnp.float32),
                   jax.ShapeDtypeStruct((cout_p, 1), jnp.float32)),
        compiler_params=pltpu.CompilerParams(
            dimension_semantics=("arbitrary", "arbitrary"),
            vmem_limit_bytes=_VMEM_LIMIT_BYTES),
    )(w_p, x_p)

    # Tiny per-channel glue (Cout_p elements): fold BN into scale/shift.
    # NOTE: single-pass E[y^2]-E[y]^2 can cancel in f32 when |mean| >> std; clamped at 0.
    inv_count = 1.0 / float(count)
    mean = s1 * inv_count
    var = jnp.maximum(s2 * inv_count - mean * mean, 0.0)          # biased variance
    gamma_p = jnp.zeros((cout_p, 1), jnp.float32).at[:Cout, 0].set(gamma.astype(jnp.float32))
    beta_p = jnp.zeros((cout_p, 1), jnp.float32).at[:Cout, 0].set(beta.astype(jnp.float32))
    scale = gamma_p * jax.lax.rsqrt(var + EPS)
    shift = beta_p - mean * scale

    # ---- Pass 2: apply (independent tiles -> "parallel"; shards across v7x's 2 TCs) ----
    o_spec = pl.BlockSpec((1, cout_p, l_tile), lambda n, l: (n, 0, l))
    out_p = pl.pallas_call(
        _apply_kernel,
        grid=grid,
        in_specs=[vec_spec, vec_spec, w_spec, x_spec],
        out_specs=o_spec,
        out_shape=jax.ShapeDtypeStruct((N, cout_p, l_p), out_dtype),
        compiler_params=pltpu.CompilerParams(
            dimension_semantics=("parallel", "parallel"),
            vmem_limit_bytes=_VMEM_LIMIT_BYTES),
    )(scale, shift, w_p, x_p)

    if (cout_p, l_p) == (Cout, L):
        return out_p
    return out_p[:, :Cout, :L]                                    # (N, C_out, L), already native layout


def conv_bn_relu_1d_reference(x, weight, bias, gamma, beta):
    """Pure-JAX reference matching PyTorch training-mode semantics (bias included)."""
    xf = x.astype(jnp.float32)
    w = weight[:, :, 0].astype(jnp.float32)                       # (Cout, Cin)
    y = jnp.einsum('oc,ncl->nol', w, xf) + bias[None, :, None]
    mean = jnp.mean(y, axis=(0, 2), keepdims=True)
    var = jnp.mean((y - mean) ** 2, axis=(0, 2), keepdims=True)   # biased variance
    y_hat = (y - mean) * jax.lax.rsqrt(var + EPS)
    z = gamma[None, :, None] * y_hat + beta[None, :, None]
    return jnp.where(z >= 0, z, LEAKY_SLOPE * z).astype(x.dtype)


if __name__ == "__main__":
    # Small shapes consistent with the module: x is (batch, inplanes, length).
    N, C_IN, C_OUT, L = 2, 4, 8, 16

    key = jax.random.PRNGKey(0)
    kx, kw, kb, kg, kbt = jax.random.split(key, 5)

    x = jax.random.normal(kx, (N, C_IN, L), dtype=jnp.float32)
    weight = jax.random.normal(kw, (C_OUT, C_IN, 1), dtype=jnp.float32) * (1.0 / jnp.sqrt(C_IN))
    bias = jax.random.normal(kb, (C_OUT,), dtype=jnp.float32) * 0.05
    gamma = 1.0 + 0.1 * jax.random.normal(kg, (C_OUT,), dtype=jnp.float32)
    beta = 0.1 * jax.random.normal(kbt, (C_OUT,), dtype=jnp.float32)

    ref = conv_bn_relu_1d_reference(x, weight, bias, gamma, beta)

    # f32 operand path: tight agreement with the f32 reference.
    out_f32 = jax.block_until_ready(
        conv_bn_relu_1d_pallas(x, weight, bias, gamma, beta, matmul_dtype=jnp.float32))
    assert out_f32.shape == ref.shape, (out_f32.shape, ref.shape)
    assert jnp.allclose(out_f32, ref, atol=1e-4, rtol=1e-4), "f32 Pallas output mismatch vs reference"

    # Default bf16 operand path (full-rate MXU, half the HBM read of x); looser tolerance vs f32 ref.
    out_bf16 = jax.block_until_ready(conv_bn_relu_1d_pallas(x, weight, bias, gamma, beta))
    assert out_bf16.shape == ref.shape, (out_bf16.shape, ref.shape)
    assert jnp.allclose(out_bf16, ref, atol=5e-2, rtol=5e-2), "bf16 Pallas output mismatch vs reference"

    print("KERNEL_OK")
</pallas_src>

<mosaic_0001>
module attributes {stable_mosaic.version = 11 : i64} {
  func.func @_stats_kernel(%arg0: i32, %arg1: i32, %arg2: memref<16x8xf32, #tpu.memory_space<vmem>>, %arg3: memref<1x8x128xf32, #tpu.memory_space<vmem>>, %arg4: memref<16x1xf32, #tpu.memory_space<vmem>>, %arg5: memref<16x1xf32, #tpu.memory_space<vmem>>) attributes {dimension_semantics = [#tpu.dimension_semantics<arbitrary>, #tpu.dimension_semantics<arbitrary>], iteration_bounds = array<i64: 2, 1>, scalar_prefetch = 0 : i64, scratch_operands = 0 : i64, tpu.core_type = #tpu.core_type<tc>, window_params = [{pipeline_mode = #tpu.pipeline_mode<synchronous>, transform_indices = @transform_0, window_bounds = array<i64: 16, 8>}, {transform_indices = @transform_1, window_bounds = array<i64: 1, 8, 128>}, {pipeline_mode = #tpu.pipeline_mode<synchronous>, transform_indices = @transform_2, window_bounds = array<i64: 16, 1>}, {pipeline_mode = #tpu.pipeline_mode<synchronous>, transform_indices = @transform_3, window_bounds = array<i64: 16, 1>}]} {
    %c0_i32 = arith.constant 0 : i32
    %0 = arith.cmpi eq, %arg0, %c0_i32 : i32
    %c0_i32_0 = arith.constant 0 : i32
    %1 = arith.cmpi eq, %arg1, %c0_i32_0 : i32
    %2 = arith.andi %0, %1 : i1
    %3 = arith.extui %2 : i1 to i32
    %c0_i32_1 = arith.constant 0 : i32
    %4 = arith.cmpi ne, %3, %c0_i32_1 : i32
    scf.if %4 {
      %cst_16 = arith.constant 0.000000e+00 : f32
      %20 = vector.broadcast %cst_16 : f32 to vector<16x1xf32>
      %c0_17 = arith.constant 0 : index
      %c0_18 = arith.constant 0 : index
      %21 = vector.load %arg4[%c0_17, %c0_18] : memref<16x1xf32, #tpu.memory_space<vmem>>, vector<16x1xf32>
      tpu.vector_store %arg4[%c0_17, %c0_18], %20 {strides = array<i32>} : memref<16x1xf32, #tpu.memory_space<vmem>>, vector<16x1xf32>,
      %cst_19 = arith.constant 0.000000e+00 : f32
      %22 = vector.broadcast %cst_19 : f32 to vector<16x1xf32>
      %c0_20 = arith.constant 0 : index
      %c0_21 = arith.constant 0 : index
      %23 = vector.load %arg5[%c0_20, %c0_21] : memref<16x1xf32, #tpu.memory_space<vmem>>, vector<16x1xf32>
      tpu.vector_store %arg5[%c0_20, %c0_21], %22 {strides = array<i32>} : memref<16x1xf32, #tpu.memory_space<vmem>>, vector<16x1xf32>,
    } else {
    }
    %c0 = arith.constant 0 : index
    %c0_2 = arith.constant 0 : index
    %5 = vector.load %arg2[%c0, %c0_2] : memref<16x8xf32, #tpu.memory_space<vmem>>, vector<16x8xf32>
    %c0_3 = arith.constant 0 : index
    %c0_4 = arith.constant 0 : index
    %c0_5 = arith.constant 0 : index
    %6 = vector.load %arg3[%c0_3, %c0_4, %c0_5] : memref<1x8x128xf32, #tpu.memory_space<vmem>>, vector<1x8x128xf32>
    %7 = vector.shape_cast %6 : vector<1x8x128xf32> to vector<8x128xf32>
    %cst = arith.constant dense<0.000000e+00> : vector<16x128xf32>
    %8 = tpu.matmul %5, %7, %cst {dimension_numbers = #tpu.dot_dimension_numbers<[1], [0], [0], [1], [0, 0, 1, 1], [], []>} : vector<16x8xf32>, vector<8x128xf32>, vector<16x128xf32> -> vector<16x128xf32>
    %c0_6 = arith.constant 0 : index
    %c0_7 = arith.constant 0 : index
    %9 = vector.load %arg4[%c0_6, %c0_7] : memref<16x1xf32, #tpu.memory_space<vmem>>, vector<16x1xf32>
    %cst_8 = arith.constant dense<0.000000e+00> : vector<16xf32>
    %10 = vector.multi_reduction <add>, %8, %cst_8 [1] : vector<16x128xf32> to vector<16xf32>
    %11 = vector.shape_cast %10 : vector<16xf32> to vector<16x1xf32>
    %12 = arith.addf %9, %11 : vector<16x1xf32>
    %c0_9 = arith.constant 0 : index
    %c0_10 = arith.constant 0 : index
    %13 = vector.load %arg4[%c0_9, %c0_10] : memref<16x1xf32, #tpu.memory_space<vmem>>, vector<16x1xf32>
    tpu.vector_store %arg4[%c0_9, %c0_10], %12 {strides = array<i32>} : memref<16x1xf32, #tpu.memory_space<vmem>>, vector<16x1xf32>,
    %c0_11 = arith.constant 0 : index
    %c0_12 = arith.constant 0 : index
    %14 = vector.load %arg5[%c0_11, %c0_12] : memref<16x1xf32, #tpu.memory_space<vmem>>, vector<16x1xf32>
    %15 = arith.mulf %8, %8 : vector<16x128xf32>
    %cst_13 = arith.constant dense<0.000000e+00> : vector<16xf32>
    %16 = vector.multi_reduction <add>, %15, %cst_13 [1] : vector<16x128xf32> to vector<16xf32>
    %17 = vector.shape_cast %16 : vector<16xf32> to vector<16x1xf32>
    %18 = arith.addf %14, %17 : vector<16x1xf32>
    %c0_14 = arith.constant 0 : index
    %c0_15 = arith.constant 0 : index
    %19 = vector.load %arg5[%c0_14, %c0_15] : memref<16x1xf32, #tpu.memory_space<vmem>>, vector<16x1xf32>
    tpu.vector_store %arg5[%c0_14, %c0_15], %18 {strides = array<i32>} : memref<16x1xf32, #tpu.memory_space<vmem>>, vector<16x1xf32>,
    return
  }
  func.func @transform_0(%arg0: i32, %arg1: i32) -> (i32, i32) {
    %c0_i32 = arith.constant 0 : i32
    %c0_i32_0 = arith.constant 0 : i32
    %c0_i32_1 = arith.constant 0 : i32
    return %c0_i32, %c0_i32_0 : i32, i32
  }
  func.func @transform_1(%arg0: i32, %arg1: i32) -> (i32, i32, i32) {
    %c0_i32 = arith.constant 0 : i32
    %c0_i32_0 = arith.constant 0 : i32
    return %arg0, %c0_i32, %arg1 : i32, i32, i32
  }
  func.func @transform_2(%arg0: i32, %arg1: i32) -> (i32, i32) {
    %c0_i32 = arith.constant 0 : i32
    %c0_i32_0 = arith.constant 0 : i32
    %c0_i32_1 = arith.constant 0 : i32
    return %c0_i32, %c0_i32_0 : i32, i32
  }
  func.func @transform_3(%arg0: i32, %arg1: i32) -> (i32, i32) {
    %c0_i32 = arith.constant 0 : i32
    %c0_i32_0 = arith.constant 0 : i32
    %c0_i32_1 = arith.constant 0 : i32
    return %c0_i32, %c0_i32_0 : i32, i32
  }
}

</mosaic_0001>

<llo_original>
// kernel: tpu_custom_call.1
$region0: #{tpu_custom_call.1}
  #allocation0 [shape = 'u32[]', space=smem, size = 0x4, offset = 0x4, fixed_abs, tag = 'smem constant byte address 0x4 - core index']
  #allocation1 [shape = 'u32[144,128]{1,0:T(1,128)}', space=vmem, size = 0x12000, scoped, tag = 'internal scratch']
  %s0 = inlined_call_operand.vmem [shape: f32[16,8], index: 0, kind: input, shape index: {}]
  %s1 = inlined_call_operand.vmem [shape: f32[2,8,128], index: 1, kind: input, shape index: {}]
  %s2 = inlined_call_operand.vmem [shape: f32[16,1], index: 2, kind: output, shape index: {0}]
  %s3 = inlined_call_operand.vmem [shape: f32[16,1], index: 3, kind: output, shape index: {1}]
  %4 = xla_tuple %s2, %s3
  %s5 = sld [smem:[#allocation0]]
  $region53: #{tpu_custom_call.1} parent=0
    _
  %s7 = ssub.s32 1, %s5
  %s8 = scalar_select 0, %s7, %s5
  loop: start=0, step=1, limit=4
  $region2: #{tpu_custom_call.1} parent=0 // loop_pre_header
    _
  $region3: #{tpu_custom_call.1} parent=0 // loop_header
    %s10 = sphi 0, %s14
    %p11 = scmp.ge.s32.totalorder %s10, 4
    %s17 = sphi 0, %s29
    %s18 = sphi 0, %s25
    %s19 = sphi 0, %s17
    %s20 = sphi 0, %s18
    %s21 = sphi 0, %s19
    %s22 = sphi 0, %s20
    %s30 = sphi 0, %s30
    %s32 = sphi 0, %s30
    %s33 = sphi 0, %s32
    %s47 = sphi 0, %s33
    %s55 = sphi 0, %s57
    %s58 = sphi 0, %s55
    %s59 = sphi 0, %s58
    %s75 = sphi 0, %s59
    %s79 = sphi 0, %s79
    %s81 = sphi 0, %s79
    %s82 = sphi 0, %s81
    %s96 = sphi 0, %s82
    %s100 = sphi 0, %s100
    %s102 = sphi 0, %s100
    %s103 = sphi 0, %s102
    %s117 = sphi 0, %s103
  $region4: #{tpu_custom_call.1} parent=0 // loop_header_branch
    %13 = sbr.rel (%p11) target = $region8
  $region5: #{tpu_custom_call.1} parent=0 // loop_body
    %s15 = ssub.s32 %s10, 1
    %s16 = ssub.s32 %s10, 2
    %s23 = sadd.s32 1, %s18
    %p24 = scmp.ge.s32.totalorder %s23, 1
    %s25 = scalar_select %p24, 0, %s23
    %s26 = sadd.s32 1, %s17
    %s27 = scalar_select %p24, %s26, %s17
    %p28 = scmp.ge.s32.totalorder %s27, 2
    %s29 = scalar_select %p28, 0, %s27
    %s31 = sadd.s32 %s30, 1
    %p34 = scmp.eq.s32.totalorder %s10, 1
    %p35 = scmp.ne.s32.totalorder %s30, %s32
    %p36 = scmp.eq.s32.totalorder %s10, 0
    %p37 = por %p35, %p36
    %p38 = scmp.ne.s32.totalorder %s30, %s32
    %p39 = scmp.eq.s32.totalorder %s15, 1
    %p40 = por %p38, %p39
    %p41 = scmp.ne.s32.totalorder %s32, %s33
    %p42 = scmp.eq.s32.totalorder %s15, 0
    %p43 = por %p41, %p42
    %p44 = scmp.ne.s32.totalorder %s32, %s33
    %p45 = scmp.eq.s32.totalorder %s16, 1
    %p46 = por %p44, %p45
    %p48 = scmp.ne.s32.totalorder %s33, %s47
    %p49 = scmp.eq.s32.totalorder %s16, 0
    %p50 = por %p48, %p49
    %s51 = ssub.s32 %s17, %s29
    %s52 = ssub.s32 %s18, %s25
    %s53 = sor.u32 %s51, %s52
    %p54 = scmp.eq.s32.totalorder %s53, 0
    %s56 = sadd.s32 %s55, 1
    %s57 = scalar_select %p54, %s55, %s56
    %p60 = pneg %p54
    %p61 = scmp.eq.s32.totalorder %s10, 1
    %p62 = por %p60, %p61
    %p63 = scmp.ne.s32.totalorder %s55, %s58
    %p64 = scmp.eq.s32.totalorder %s10, 0
    %p65 = por %p63, %p64
    %p66 = scmp.ne.s32.totalorder %s55, %s58
    %p67 = scmp.eq.s32.totalorder %s15, 1
    %p68 = por %p66, %p67
    %p69 = scmp.ne.s32.totalorder %s58, %s59
    %p70 = scmp.eq.s32.totalorder %s15, 0
    %p71 = por %p69, %p70
    %p72 = scmp.ne.s32.totalorder %s58, %s59
    %p73 = scmp.eq.s32.totalorder %s16, 1
    %p74 = por %p72, %p73
    %p76 = scmp.ne.s32.totalorder %s59, %s75
    %p77 = scmp.eq.s32.totalorder %s16, 0
    %p78 = por %p76, %p77
    %s80 = sadd.s32 %s79, 1
    %p83 = scmp.eq.s32.totalorder %s10, 1
    %p84 = scmp.ne.s32.totalorder %s79, %s81
    %p85 = scmp.eq.s32.totalorder %s10, 0
    %p86 = por %p84, %p85
    %p87 = scmp.ne.s32.totalorder %s79, %s81
    %p88 = scmp.eq.s32.totalorder %s15, 1
    %p89 = por %p87, %p88
    %p90 = scmp.ne.s32.totalorder %s81, %s82
    %p91 = scmp.eq.s32.totalorder %s15, 0
    %p92 = por %p90, %p91
    %p93 = scmp.ne.s32.totalorder %s81, %s82
    %p94 = scmp.eq.s32.totalorder %s16, 1
    %p95 = por %p93, %p94
    %p97 = scmp.ne.s32.totalorder %s82, %s96
    %p98 = scmp.eq.s32.totalorder %s16, 0
    %p99 = por %p97, %p98
    %s101 = sadd.s32 %s100, 1
    %p104 = scmp.eq.s32.totalorder %s10, 1
    %p105 = scmp.ne.s32.totalorder %s100, %s102
    %p106 = scmp.eq.s32.totalorder %s10, 0
    %p107 = por %p105, %p106
    %p108 = scmp.ne.s32.totalorder %s100, %s102
    %p109 = scmp.eq.s32.totalorder %s15, 1
    %p110 = por %p108, %p109
    %p111 = scmp.ne.s32.totalorder %s102, %s103
    %p112 = scmp.eq.s32.totalorder %s15, 0
    %p113 = por %p111, %p112
    %p114 = scmp.ne.s32.totalorder %s102, %s103
    %p115 = scmp.eq.s32.totalorder %s16, 1
    %p116 = por %p114, %p115
    %p118 = scmp.ne.s32.totalorder %s103, %s117
    %p119 = scmp.eq.s32.totalorder %s16, 0
    %p120 = por %p118, %p119
    %p121 = scmp.le.s32.totalorder 1, %s10
    %p122 = scmp.lt.s32.totalorder %s10, 3
    %p123 = pnand %p121, %p122
    %p124 = pneg %p123
    // Predicated region
    $region9: #{tpu_custom_call.1} parent=5 // pred_check
      _
    $region10: #{tpu_custom_call.1} parent=5 // pred_check_branch
      %126 = sbr.rel (%p123) target = $region12
    $region11: #{tpu_custom_call.1} parent=5 // pred_region
      %s127 = ssub.s32 %s10, 1
      // Predicated region
      $region13: #{tpu_custom_call.1} parent=11 // pred_check
        %p128 = pneg %p43
      $region14: #{tpu_custom_call.1} parent=11 // pred_check_branch
        %130 = sbr.rel (%p128) target = $region16
      $region15: #{tpu_custom_call.1} parent=11 // pred_region
        _
      $region16: #{tpu_custom_call.1} parent=11 // pred_fallthru
        _
    $region12: #{tpu_custom_call.1} parent=5 // pred_fallthru
      _
    %p131 = scmp.lt.s32.totalorder %s10, 2
    // Predicated region
    $region17: #{tpu_custom_call.1} parent=5 // pred_check
      %p132 = pneg %p131
    $region18: #{tpu_custom_call.1} parent=5 // pred_check_branch
      %134 = sbr.rel (%p132) target = $region20
    $region19: #{tpu_custom_call.1} parent=5 // pred_region
      // Predicated region
      $region21: #{tpu_custom_call.1} parent=19 // pred_check
        %p135 = pneg %p65
      $region22: #{tpu_custom_call.1} parent=19 // pred_check_branch
        %137 = sbr.rel (%p135) target = $region24
      $region23: #{tpu_custom_call.1} parent=19 // pred_region
        %p138 = scmp.lt.s32.totalorder %s17, 1
        %s139 = scalar_select %p138, %s17, 1
        %p140 = scmp.lt.s32.totalorder %s18, 0
        %s141 = scalar_select %p140, %s18, 0
        %s142 = sadd.s32 %s141, %s139
        %s143 = smul.addr %s142, 8
        %s144 = scalar_lea.vmem %s1, %s143
      $region24: #{tpu_custom_call.1} parent=19 // pred_fallthru
        _
    $region20: #{tpu_custom_call.1} parent=5 // pred_fallthru
      _
    %p145 = scmp.le.s32.totalorder 1, %s10
    %p146 = scmp.lt.s32.totalorder %s10, 3
    %p147 = pnand %p145, %p146
    %p148 = pneg %p147
    // Predicated region
    $region25: #{tpu_custom_call.1} parent=5 // pred_check
      _
    $region26: #{tpu_custom_call.1} parent=5 // pred_check_branch
      %150 = sbr.rel (%p147) target = $region28
    $region27: #{tpu_custom_call.1} parent=5 // pred_region
      %s151 = ssub.s32 %s10, 1
      %p152 = pneg %p43
      %p153 = pneg %p40
      %p154 = scmp.lt.s32.totalorder %s19, 1
      %s155 = scalar_select %p154, %s19, 1
      %p156 = scmp.lt.s32.totalorder %s20, 0
      %s157 = scalar_select %p156, %s20, 0
      %s158 = sadd.s32 %s157, %s155
      %s159 = smul.addr %s158, 8
      %s160 = scalar_lea.vmem %s1, %s159
      %p161 = pneg %p71
      %p162 = pneg %p68
      %p163 = pneg %p92
      %p164 = pneg %p89
      %p165 = pneg %p113
      %p166 = pneg %p110
      %p167 = scmp.lt.s32.totalorder %s19, 1
      %s168 = scalar_select %p167, %s19, 1
      %p169 = scmp.lt.s32.totalorder %s20, 0
      %s170 = scalar_select %p169, %s20, 0
      %s171 = sadd.s32 %s170, %s168
      %s172 = smul.addr %s171, 8
      %s173 = scalar_lea.vmem %s1, %s172
      %p174 = scmp.eq.s32.totalorder %s19, 0
      %p175 = scmp.eq.s32.totalorder %s20, 0
      %p176 = pnand %p174, %p175
      %p177 = pneg %p176
      // Predicated region
      $region29: #{tpu_custom_call.1} parent=27 // pred_check
        _
      $region30: #{tpu_custom_call.1} parent=27 // pred_check_branch
        %179 = sbr.rel (%p176) target = $region32
      $region31: #{tpu_custom_call.1} parent=27 // pred_region
        %vm180 = vcmask 7168
        %181 = vst.msk [vmem:[%s2] sm:$0xff] %vm180, 0.0
        %182 = vst.msk [vmem:[%s2 + $0x8] sm:$0xff] %vm180, 0.0
        %183 = vst.msk [vmem:[%s3] sm:$0xff] %vm180, 0.0
        %184 = vst.msk [vmem:[%s3 + $0x8] sm:$0xff] %vm180, 0.0
      $region32: #{tpu_custom_call.1} parent=27 // pred_fallthru
        _
      %v185 = vld [vmem:[%s0] sm:$0xff]
      %v186 = vld [vmem:[%s0 + $0x8] sm:$0xff]
      %v187 = vld [vmem:[%s173] sm:$0xff]
      %vm188 = vcmask 64512
      %v190 = vsel %vm188, %v185, 0
      %v193 = vsel %vm188, %v186, 0
      %195 = vmatprep.subr.mxu0 0.0
      %196 = vmatpush1.msra.mxu0 %v187
      %197 = vmatprep.subr.mxu0 0.0
      %198 = vmatpush1.msra.mxu0 0.0
      %199 = vmatprep.subr.mxu0 0.0
      %200 = vmatpush1.msra.mxu0 0.0
      %201 = vmatprep.subr.mxu0 0.0
      %202 = vmatpush1.msra.mxu0 0.0
      %203 = vmatprep.subr.mxu0 0.0
      %204 = vmatpush1.msra.mxu0 0.0
      %205 = vmatprep.subr.mxu0 0.0
      %206 = vmatpush1.msra.mxu0 0.0
      %207 = vmatprep.subr.mxu0 0.0
      %208 = vmatpush1.msra.mxu0 0.0
      %209 = vmatprep.subr.mxu0 0.0
      %210 = vmatpush1.msra.mxu0 0.0
      %211 = vmatprep.subr.mxu0 0.0
      %212 = vmatpush1.msra.mxu0 0.0
      %213 = vmatprep.subr.mxu0 0.0
      %214 = vmatpush1.msra.mxu0 0.0
      %215 = vmatprep.subr.mxu0 0.0
      %216 = vmatpush1.msra.mxu0 0.0
      %217 = vmatprep.subr.mxu0 0.0
      %218 = vmatpush1.msra.mxu0 0.0
      %219 = vmatprep.subr.mxu0 0.0
      %220 = vmatpush1.msra.mxu0 0.0
      %221 = vmatprep.subr.mxu0 0.0
      %222 = vmatpush1.msra.mxu0 0.0
      %223 = vmatprep.subr.mxu0 0.0
      %224 = vmatpush1.msra.mxu0 0.0
      %225 = vmatprep.subr.mxu0 0.0
      %226 = vmatpush1.msra.mxu0 0.0
      %227 = vmatprep.subr.mxu0 0.0
      %228 = vmatpush1.msra.mxu0 0.0
      %229 = vmatprep.subr.mxu0 0.0
      %230 = vmatpush1.msra.mxu0 0.0
      %231 = vmatprep.subr.mxu0 0.0
      %232 = vmatpush1.msra.mxu0 0.0
      %233 = vmatprep.subr.mxu0 0.0
      %234 = vmatpush1.msra.mxu0 0.0
      %235 = vmatprep.subr.mxu0 0.0
      %236 = vmatpush1.msra.mxu0 0.0
      %237 = vmatprep.subr.mxu0 0.0
      %238 = vmatpush1.msra.mxu0 0.0
      %239 = vmatprep.subr.mxu0 0.0
      %240 = vmatpush1.msra.mxu0 0.0
      %241 = vmatprep.subr.mxu0 0.0
      %242 = vmatpush1.msra.mxu0 0.0
      %243 = vmatprep.subr.mxu0 0.0
      %244 = vmatpush1.msra.mxu0 0.0
      %245 = vmatprep.subr.mxu0 0.0
      %246 = vmatpush1.msra.mxu0 0.0
      %247 = vmatprep.subr.mxu0 0.0
      %248 = vmatpush1.msra.mxu0 0.0
      %249 = vmatprep.subr.mxu0 0.0
      %250 = vmatpush1.msra.mxu0 0.0
      %251 = vmatprep.subr.mxu0 0.0
      %252 = vmatpush1.msra.mxu0 0.0
      %253 = vmatprep.subr.mxu0 0.0
      %254 = vmatpush1.msra.mxu0 0.0
      %255 = vmatprep.subr.mxu0 0.0
      %256 = vmatpush1.msra.mxu0 0.0
      %257 = vmatprep.subr.mxu0 0.0
      %258 = vmatpush1.msra.mxu0 0.0
      %259 = vmatprep.mubr.f32.mxu0 0.0
      %260 = vmatmul.mubr.f32.gmra.mrb[0].mxu0 %v190
      %v261 = vpop.f32.mrb[0].mxu0
      %v262 = vadd.f32 0.0, %v261
      %v263 = vpop.f32.mrb[0].mxu0
      %264 = vmatprep.mubr.f32.mxu0 0.0
      %265 = vmatmul.mubr.f32.gmra.mrb[0].mxu0 %v193
      %v266 = vpop.f32.mrb[0].mxu0
      %v267 = vadd.f32 0.0, %v266
      %v268 = vpop.f32.mrb[0].mxu0
      %269 = vdwg.mxu0
      %v270 = vld [vmem:[%s2] sm:$0xff]
      %v271 = vld [vmem:[%s2 + $0x8] sm:$0xff]
      %272 = vadd.xlane.f32.xlu0 %v262
      %v273 = vpop.xlane.xlu0 %272
      %274 = vadd.xlane.f32.xlu0 %v267
      %v275 = vpop.xlane.xlu0 %274
      %v276 = vadd.f32 %v270, %v273
      %v277 = vadd.f32 %v271, %v275
      %vm278 = vcmask 7168
      %279 = vst.msk [vmem:[%s2] sm:$0xff] %vm278, %v276
      %280 = vst.msk [vmem:[%s2 + $0x8] sm:$0xff] %vm278, %v277
      %v281 = vld [vmem:[%s3] sm:$0xff]
      %v282 = vld [vmem:[%s3 + $0x8] sm:$0xff]
      %v283 = vmul.f32 %v262, %v262
      %v284 = vmul.f32 %v267, %v267
      %285 = vadd.xlane.f32.xlu0 %v283
      %v286 = vpop.xlane.xlu0 %285
      %287 = vadd.xlane.f32.xlu0 %v284
      %v288 = vpop.xlane.xlu0 %287
      %v289 = vadd.f32 %v281, %v286
      %v290 = vadd.f32 %v282, %v288
      %291 = vst.msk [vmem:[%s3] sm:$0xff] %vm278, %v289
      %292 = vst.msk [vmem:[%s3 + $0x8] sm:$0xff] %vm278, %v290
      // Predicated region
      $region33: #{tpu_custom_call.1} parent=27 // pred_check
        %p293 = pneg %p89
      $region34: #{tpu_custom_call.1} parent=27 // pred_check_branch
        %295 = sbr.rel (%p293) target = $region36
      $region35: #{tpu_custom_call.1} parent=27 // pred_region
        _
      $region36: #{tpu_custom_call.1} parent=27 // pred_fallthru
        _
      // Predicated region
      $region37: #{tpu_custom_call.1} parent=27 // pred_check
        %p296 = pneg %p110
      $region38: #{tpu_custom_call.1} parent=27 // pred_check_branch
        %298 = sbr.rel (%p296) target = $region40
      $region39: #{tpu_custom_call.1} parent=27 // pred_region
        _
      $region40: #{tpu_custom_call.1} parent=27 // pred_fallthru
        _
      // Predicated region
      $region41: #{tpu_custom_call.1} parent=27 // pred_check
        %p299 = pneg %p89
      $region42: #{tpu_custom_call.1} parent=27 // pred_check_branch
        %301 = sbr.rel (%p299) target = $region44
      $region43: #{tpu_custom_call.1} parent=27 // pred_region
        _
      $region44: #{tpu_custom_call.1} parent=27 // pred_fallthru
        _
      // Predicated region
      $region45: #{tpu_custom_call.1} parent=27 // pred_check
        %p302 = pneg %p110
      $region46: #{tpu_custom_call.1} parent=27 // pred_check_branch
        %304 = sbr.rel (%p302) target = $region48
      $region47: #{tpu_custom_call.1} parent=27 // pred_region
        _
      $region48: #{tpu_custom_call.1} parent=27 // pred_fallthru
        _
    $region28: #{tpu_custom_call.1} parent=5 // pred_fallthru
      _
    %p305 = scmp.le.s32.totalorder 2, %s10
    // Predicated region
    $region49: #{tpu_custom_call.1} parent=5 // pred_check
      %p306 = pneg %p305
    $region50: #{tpu_custom_call.1} parent=5 // pred_check_branch
      %308 = sbr.rel (%p306) target = $region52
    $region51: #{tpu_custom_call.1} parent=5 // pred_region
      %s309 = ssub.s32 %s10, 2
    $region52: #{tpu_custom_call.1} parent=5 // pred_fallthru
      _
  $region6: #{tpu_custom_call.1} parent=0 // loop_footer
    %s14 = sadd.s32 1, %s10
  $region7: #{tpu_custom_call.1} parent=0 // loop_footer_branch
    %9 = sbr.rel target = $region3
  $region8: #{tpu_custom_call.1} parent=0 // loop_exit
    _

</llo_original>
